<compile_context>
chip_gen: v7x
topology: tpu7x:2x2x1
jax: 0.10.0
libtpu: 0.0.40
codegen_flags: <defaults>
</compile_context>

<pallas_src>
import jax
import jax.numpy as jnp
from jax.experimental import pallas as pl
from jax.experimental.pallas import tpu as pltpu


def _round_up(n, m):
    return ((n + m - 1) // m) * m


def _cdiv(a, b):
    return -(-a // b)


# ----------------------------------------------------------------------------- #
# Kernel
# ----------------------------------------------------------------------------- #
def _mlp_kernel(x_ref,
                w1_ref, b1_ref,
                w2t_ref, b2t_ref,
                w3t_ref, b3t_ref,
                w4t_ref, b4_ref,
                o_ref):
    """Fused 4-layer MLP forward on one batch tile.

    x_ref   : (TB, D)   stored dtype (f32); cast to compute dtype in VMEM
    w1_ref  : (D, 128)  compute dtype            b1_ref  : (1, 128)  f32
    w2t_ref : (64, 128) compute dtype            b2t_ref : (64, 1)   f32
    w3t_ref : (32, 64)  compute dtype            b3t_ref : (32, 1)   f32
    w4t_ref : (1, 32)   compute dtype            b4_ref  : (1, 1)    f32
    o_ref   : (1, TB)   f32 logits, batch on the lane axis
    """
    cd = w1_ref.dtype

    # Cast the streamed f32 tile to the compute dtype in VMEM (no extra HBM pass).
    x = x_ref[...].astype(cd)

    # Layer 1: (TB, D) @ (D, 128) -> (TB, 128); f32 accumulate, bias+ReLU in f32.
    h = jnp.dot(x, w1_ref[...], preferred_element_type=jnp.float32)
    h = jnp.maximum(h + b1_ref[...], 0.0)
    # Dropout(0.3) — identity at inference time.

    # Layer 2 (switch to feature-major): (64,128) x (TB,128)^T -> (64, TB).
    h = jax.lax.dot_general(
        w2t_ref[...], h.astype(cd),
        dimension_numbers=(((1,), (1,)), ((), ())),
        preferred_element_type=jnp.float32)
    h = jnp.maximum(h + b2t_ref[...], 0.0)

    # Layer 3: (32, 64) @ (64, TB) -> (32, TB).
    h = jnp.dot(w3t_ref[...], h.astype(cd), preferred_element_type=jnp.float32)
    h = jnp.maximum(h + b3t_ref[...], 0.0)

    # Layer 4: (1, 32) @ (32, TB) -> (1, TB); lane-dense output store.
    out = jnp.dot(w4t_ref[...], h.astype(cd), preferred_element_type=jnp.float32)
    o_ref[...] = (out + b4_ref[...]).astype(o_ref.dtype)


# ----------------------------------------------------------------------------- #
# Tiling / generation heuristics
# ----------------------------------------------------------------------------- #
def _tpu_generation_hints():
    """Best-effort (vmem_budget_bytes, tensorcores_per_chip)."""
    kind = ""
    try:
        kind = jax.devices()[0].device_kind.lower()
    except Exception:
        pass
    if ("v5" in kind) or ("v6" in kind):
        # 128 MiB physical VMEM, single TensorCore per chip.
        return 96 * 1024 * 1024, 1
    if "7" in kind:
        # v7x: 64 MiB VMEM per TC, 2 TCs per chip.
        return 48 * 1024 * 1024, 2
    # Unknown generation: conservative (fits v7x's per-TC VMEM).
    return 48 * 1024 * 1024, 2


def _per_row_vmem_bytes(d, x_itemsize, cd_itemsize):
    """Approximate VMEM bytes per batch row inside one grid step."""
    return (2 * d * x_itemsize                 # double-buffered x tile
            + d * cd_itemsize                  # in-VMEM cast of x
            + 128 * (4 + cd_itemsize)          # h1 (f32) + compute-dtype copy
            + 64 * (4 + cd_itemsize)           # h2
            + 32 * (4 + cd_itemsize)           # h3
            + 2 * 4)                           # double-buffered (1, TB) output


def _select_batch_tile(batch, d, x_itemsize, cd_itemsize, vmem_budget, num_tc,
                       batch_tile=None):
    per_row = _per_row_vmem_bytes(d, x_itemsize, cd_itemsize)
    # Leave half the budget as headroom (weights, compiler scratch, spills).
    tb_cap = (int(0.5 * vmem_budget) // max(per_row, 1)) // 128 * 128
    tb_max = min(8192, max(128, tb_cap))

    if batch_tile is not None:
        tb = max(128, _round_up(batch_tile, 128))
        num_tiles = _cdiv(batch, tb)
        return tb, num_tiles, num_tiles * tb

    num_tiles = _cdiv(batch, tb_max)
    # On 2-TC chips, split large batches so the parallel grid feeds both cores.
    if num_tc >= 2 and batch >= 1024:
        num_tiles = max(num_tiles, 2)
    # Balance tiles: pad at most ~(128 * num_tiles) rows, never a full tb_max.
    tb = _round_up(_cdiv(batch, num_tiles), 128)
    return tb, num_tiles, num_tiles * tb


# ----------------------------------------------------------------------------- #
# Parameter preparation (call once, outside the forward path)
# ----------------------------------------------------------------------------- #
def prepare_params(params, compute_dtype=jnp.bfloat16):
    """Hoisted cast/transpose: weights to compute dtype (layers 2-4 transposed
    to feature-major), biases to f32 in the shape the kernel broadcasts."""
    return {
        "w1": params["w1"].astype(compute_dtype),                 # (D, 128)
        "b1": params["b1"].reshape(1, 128).astype(jnp.float32),
        "w2t": params["w2"].T.astype(compute_dtype),              # (64, 128)
        "b2t": params["b2"].reshape(64, 1).astype(jnp.float32),
        "w3t": params["w3"].T.astype(compute_dtype),              # (32, 64)
        "b3t": params["b3"].reshape(32, 1).astype(jnp.float32),
        "w4t": params["w4"].T.astype(compute_dtype),              # (1, 32)
        "b4": params["b4"].reshape(1, 1).astype(jnp.float32),
    }


# ----------------------------------------------------------------------------- #
# Forward
# ----------------------------------------------------------------------------- #
def binary_classifier_forward(x, prepared, *, batch_tile=None, training=False):
    """Run the tiled, fused MLP Pallas kernel.

    x        : (batch, input_dim) array (kept in its stored dtype, e.g. f32)
    prepared : output of prepare_params()
    returns  : (batch, 1) float32 logits
    """
    # TODO(synk): training-mode dropout not implemented; inference only.
    assert not training, "Dropout(0.3) is only implemented for inference mode."

    batch, d = x.shape
    cd = prepared["w1"].dtype
    vmem_budget, num_tc = _tpu_generation_hints()

    tb, num_tiles, batch_pad = _select_batch_tile(
        batch, d, x.dtype.itemsize, jnp.dtype(cd).itemsize,
        vmem_budget, num_tc, batch_tile=batch_tile)

    # Pad only when needed; x keeps its stored dtype (cast happens in-kernel).
    x_p = x if batch_pad == batch else jnp.pad(x, ((0, batch_pad - batch), (0, 0)))

    w1, b1 = prepared["w1"], prepared["b1"]
    w2t, b2t = prepared["w2t"], prepared["b2t"]
    w3t, b3t = prepared["w3t"], prepared["b3t"]
    w4t, b4 = prepared["w4t"], prepared["b4"]

    weight_bytes = sum(a.size * a.dtype.itemsize
                       for a in (w1, b1, w2t, b2t, w3t, b3t, w4t, b4))
    flops = 2 * batch_pad * (d * 128 + 128 * 64 + 64 * 32 + 32 * 1)
    bytes_accessed = x_p.size * x_p.dtype.itemsize + weight_bytes + batch_pad * 4

    # Generation-aware VMEM limit from the actual footprint (with margin).
    footprint = (_per_row_vmem_bytes(d, x_p.dtype.itemsize, jnp.dtype(cd).itemsize)
                 * tb + 2 * weight_bytes + (2 << 20))
    vmem_limit = int(min(vmem_budget, max(2 * footprint, 8 << 20)))

    const = lambda i: (0, 0)  # same block every step -> weights stay resident

    out_flat = pl.pallas_call(
        _mlp_kernel,
        out_shape=jax.ShapeDtypeStruct((1, batch_pad), jnp.float32),
        grid=(num_tiles,),
        in_specs=[
            pl.BlockSpec((tb, d), lambda i: (i, 0)),   # x streamed over batch
            pl.BlockSpec(w1.shape, const),
            pl.BlockSpec(b1.shape, const),
            pl.BlockSpec(w2t.shape, const),
            pl.BlockSpec(b2t.shape, const),
            pl.BlockSpec(w3t.shape, const),
            pl.BlockSpec(b3t.shape, const),
            pl.BlockSpec(w4t.shape, const),
            pl.BlockSpec(b4.shape, const),
        ],
        out_specs=pl.BlockSpec((1, tb), lambda i: (0, i)),
        compiler_params=pltpu.CompilerParams(
            dimension_semantics=("parallel",),
            vmem_limit_bytes=vmem_limit),
        cost_estimate=pl.CostEstimate(
            flops=int(flops),
            transcendentals=0,
            bytes_accessed=int(bytes_accessed)),
    )(x_p, w1, b1, w2t, b2t, w3t, b3t, w4t, b4)

    # (1, batch_pad) -> (batch, 1), dropping padded rows.
    return out_flat.reshape(batch_pad, 1)[:batch]


# ----------------------------------------------------------------------------- #
# Init + reference
# ----------------------------------------------------------------------------- #
def init_params(input_dim, key):
    """PyTorch-style init. nn.Linear(in, out): weight (out, in), bias (out,).
    We store W transposed as (in, out) and biases as (1, out)."""
    dims = [(input_dim, 128), (128, 64), (64, 32), (32, 1)]
    params = {}
    keys = jax.random.split(key, 2 * len(dims))
    for i, (fan_in, fan_out) in enumerate(dims):
        bound = 1.0 / jnp.sqrt(jnp.float32(fan_in))
        w = jax.random.uniform(keys[2 * i], (fan_in, fan_out),
                               minval=-bound, maxval=bound, dtype=jnp.float32)
        b = jax.random.uniform(keys[2 * i + 1], (1, fan_out),
                               minval=-bound, maxval=bound, dtype=jnp.float32)
        params[f"w{i + 1}"] = w
        params[f"b{i + 1}"] = b
    return params


def _reference_forward(x, params, compute_dtype=jnp.float32):
    """Pure-JAX reference. With compute_dtype=bf16 it mirrors the kernel's
    casting (bf16 dot operands, f32 accumulation/bias/ReLU)."""
    cd = compute_dtype

    def dense(h, w, b):
        return jnp.dot(h.astype(cd), w.astype(cd),
                       preferred_element_type=jnp.float32) + b

    h = jnp.maximum(dense(x, params["w1"], params["b1"]), 0.0)
    h = jnp.maximum(dense(h, params["w2"], params["b2"]), 0.0)
    h = jnp.maximum(dense(h, params["w3"], params["b3"]), 0.0)
    return dense(h, params["w4"], params["b4"])


if __name__ == "__main__":
    key = jax.random.PRNGKey(0)
    k_x, k_p = jax.random.split(key)

    batch = 8
    input_dim = 32  # e.g. number of engineered fraud-detection features

    x = jax.random.normal(k_x, (batch, input_dim), dtype=jnp.float32)
    params = init_params(input_dim, k_p)

    # Parameter cast/transpose hoisted out of the serving path.
    prepared = prepare_params(params, compute_dtype=jnp.bfloat16)

    out = binary_classifier_forward(x, prepared)
    out = jax.block_until_ready(out)
    assert out.shape == (batch, 1), out.shape

    # Strict check against a reference that applies the same bf16 casts.
    ref_cast = _reference_forward(x, params, compute_dtype=jnp.bfloat16)
    err_cast = jnp.max(jnp.abs(out - ref_cast))
    assert jnp.allclose(out, ref_cast, atol=2e-4, rtol=2e-4), (
        f"mismatch vs bf16-cast reference: max abs err {err_cast}")

    # Sanity check against the full-f32 reference (bf16 quantization noise only).
    ref_f32 = _reference_forward(x, params, compute_dtype=jnp.float32)
    err_f32 = jnp.max(jnp.abs(out - ref_f32))
    assert jnp.allclose(out, ref_f32, atol=5e-2, rtol=5e-2), (
        f"mismatch vs f32 reference: max abs err {err_f32}")

    print("KERNEL_OK")
</pallas_src>

<mosaic_0001>
module attributes {stable_mosaic.version = 11 : i64} {
  func.func @_mlp_kernel(%arg0: i32, %arg1: memref<128x32xf32, #tpu.memory_space<vmem>>, %arg2: memref<32x128xbf16, #tpu.memory_space<vmem>>, %arg3: memref<1x128xf32, #tpu.memory_space<vmem>>, %arg4: memref<64x128xbf16, #tpu.memory_space<vmem>>, %arg5: memref<64x1xf32, #tpu.memory_space<vmem>>, %arg6: memref<32x64xbf16, #tpu.memory_space<vmem>>, %arg7: memref<32x1xf32, #tpu.memory_space<vmem>>, %arg8: memref<1x32xbf16, #tpu.memory_space<vmem>>, %arg9: memref<1x1xf32, #tpu.memory_space<vmem>>, %arg10: memref<1x128xf32, #tpu.memory_space<vmem>>) attributes {dimension_semantics = [#tpu.dimension_semantics<parallel>], iteration_bounds = array<i64: 1>, scalar_prefetch = 0 : i64, scratch_operands = 0 : i64, tpu.core_type = #tpu.core_type<tc>, window_params = [{transform_indices = @transform_0, window_bounds = array<i64: 128, 32>}, {pipeline_mode = #tpu.pipeline_mode<synchronous>, transform_indices = @transform_1, window_bounds = array<i64: 32, 128>}, {pipeline_mode = #tpu.pipeline_mode<synchronous>, transform_indices = @transform_2, window_bounds = array<i64: 1, 128>}, {pipeline_mode = #tpu.pipeline_mode<synchronous>, transform_indices = @transform_3, window_bounds = array<i64: 64, 128>}, {pipeline_mode = #tpu.pipeline_mode<synchronous>, transform_indices = @transform_4, window_bounds = array<i64: 64, 1>}, {pipeline_mode = #tpu.pipeline_mode<synchronous>, transform_indices = @transform_5, window_bounds = array<i64: 32, 64>}, {pipeline_mode = #tpu.pipeline_mode<synchronous>, transform_indices = @transform_6, window_bounds = array<i64: 32, 1>}, {pipeline_mode = #tpu.pipeline_mode<synchronous>, transform_indices = @transform_7, window_bounds = array<i64: 1, 32>}, {pipeline_mode = #tpu.pipeline_mode<synchronous>, transform_indices = @transform_8, window_bounds = array<i64: 1, 1>}, {transform_indices = @transform_9, window_bounds = array<i64: 1, 128>}]} {
    %c0 = arith.constant 0 : index
    %c0_0 = arith.constant 0 : index
    %0 = vector.load %arg1[%c0, %c0_0] : memref<128x32xf32, #tpu.memory_space<vmem>>, vector<128x32xf32>
    %1 = arith.truncf %0 : vector<128x32xf32> to vector<128x32xbf16>
    %c0_1 = arith.constant 0 : index
    %c0_2 = arith.constant 0 : index
    %2 = vector.load %arg2[%c0_1, %c0_2] : memref<32x128xbf16, #tpu.memory_space<vmem>>, vector<32x128xbf16>
    %cst = arith.constant dense<0.000000e+00> : vector<128x128xf32>
    %3 = tpu.matmul %1, %2, %cst {dimension_numbers = #tpu.dot_dimension_numbers<[1], [0], [0], [1], [0, 0, 1, 1], [], []>} : vector<128x32xbf16>, vector<32x128xbf16>, vector<128x128xf32> -> vector<128x128xf32>
    %c0_3 = arith.constant 0 : index
    %c0_4 = arith.constant 0 : index
    %4 = vector.load %arg3[%c0_3, %c0_4] : memref<1x128xf32, #tpu.memory_space<vmem>>, vector<1x128xf32>
    %5 = vector.broadcast %4 : vector<1x128xf32> to vector<128x128xf32>
    %6 = arith.addf %3, %5 : vector<128x128xf32>
    %cst_5 = arith.constant 0.000000e+00 : f32
    %7 = vector.broadcast %cst_5 : f32 to vector<128x128xf32>
    %8 = arith.maximumf %6, %7 : vector<128x128xf32>
    %c0_6 = arith.constant 0 : index
    %c0_7 = arith.constant 0 : index
    %9 = vector.load %arg4[%c0_6, %c0_7] : memref<64x128xbf16, #tpu.memory_space<vmem>>, vector<64x128xbf16>
    %10 = arith.truncf %8 : vector<128x128xf32> to vector<128x128xbf16>
    %cst_8 = arith.constant dense<0.000000e+00> : vector<64x128xf32>
    %11 = tpu.matmul %9, %10, %cst_8 {dimension_numbers = #tpu.dot_dimension_numbers<[1], [1], [0], [0], [0, 0, 1, 0], [], []>} : vector<64x128xbf16>, vector<128x128xbf16>, vector<64x128xf32> -> vector<64x128xf32>
    %c0_9 = arith.constant 0 : index
    %c0_10 = arith.constant 0 : index
    %12 = vector.load %arg5[%c0_9, %c0_10] : memref<64x1xf32, #tpu.memory_space<vmem>>, vector<64x1xf32>
    %13 = vector.broadcast %12 : vector<64x1xf32> to vector<64x128xf32>
    %14 = arith.addf %11, %13 : vector<64x128xf32>
    %cst_11 = arith.constant 0.000000e+00 : f32
    %15 = vector.broadcast %cst_11 : f32 to vector<64x128xf32>
    %16 = arith.maximumf %14, %15 : vector<64x128xf32>
    %c0_12 = arith.constant 0 : index
    %c0_13 = arith.constant 0 : index
    %17 = vector.load %arg6[%c0_12, %c0_13] : memref<32x64xbf16, #tpu.memory_space<vmem>>, vector<32x64xbf16>
    %18 = arith.truncf %16 : vector<64x128xf32> to vector<64x128xbf16>
    %cst_14 = arith.constant dense<0.000000e+00> : vector<32x128xf32>
    %19 = tpu.matmul %17, %18, %cst_14 {dimension_numbers = #tpu.dot_dimension_numbers<[1], [0], [0], [1], [0, 0, 1, 1], [], []>} : vector<32x64xbf16>, vector<64x128xbf16>, vector<32x128xf32> -> vector<32x128xf32>
    %c0_15 = arith.constant 0 : index
    %c0_16 = arith.constant 0 : index
    %20 = vector.load %arg7[%c0_15, %c0_16] : memref<32x1xf32, #tpu.memory_space<vmem>>, vector<32x1xf32>
    %21 = vector.broadcast %20 : vector<32x1xf32> to vector<32x128xf32>
    %22 = arith.addf %19, %21 : vector<32x128xf32>
    %cst_17 = arith.constant 0.000000e+00 : f32
    %23 = vector.broadcast %cst_17 : f32 to vector<32x128xf32>
    %24 = arith.maximumf %22, %23 : vector<32x128xf32>
    %c0_18 = arith.constant 0 : index
    %c0_19 = arith.constant 0 : index
    %25 = vector.load %arg8[%c0_18, %c0_19] : memref<1x32xbf16, #tpu.memory_space<vmem>>, vector<1x32xbf16>
    %26 = arith.truncf %24 : vector<32x128xf32> to vector<32x128xbf16>
    %cst_20 = arith.constant dense<0.000000e+00> : vector<1x128xf32>
    %27 = tpu.matmul %25, %26, %cst_20 {dimension_numbers = #tpu.dot_dimension_numbers<[1], [0], [0], [1], [0, 0, 1, 1], [], []>} : vector<1x32xbf16>, vector<32x128xbf16>, vector<1x128xf32> -> vector<1x128xf32>
    %c0_21 = arith.constant 0 : index
    %c0_22 = arith.constant 0 : index
    %28 = vector.load %arg9[%c0_21, %c0_22] : memref<1x1xf32, #tpu.memory_space<vmem>>, vector<1x1xf32>
    %29 = vector.broadcast %28 : vector<1x1xf32> to vector<1x128xf32>
    %30 = arith.addf %27, %29 : vector<1x128xf32>
    %c0_23 = arith.constant 0 : index
    %c0_24 = arith.constant 0 : index
    %31 = vector.load %arg10[%c0_23, %c0_24] : memref<1x128xf32, #tpu.memory_space<vmem>>, vector<1x128xf32>
    tpu.vector_store %arg10[%c0_23, %c0_24], %30 {strides = array<i32>} : memref<1x128xf32, #tpu.memory_space<vmem>>, vector<1x128xf32>,
    return
  }
  func.func @transform_0(%arg0: i32) -> (i32, i32) {
    %c0_i32 = arith.constant 0 : i32
    %c0_i32_0 = arith.constant 0 : i32
    return %arg0, %c0_i32 : i32, i32
  }
  func.func @transform_1(%arg0: i32) -> (i32, i32) {
    %c0_i32 = arith.constant 0 : i32
    %c0_i32_0 = arith.constant 0 : i32
    %c0_i32_1 = arith.constant 0 : i32
    return %c0_i32, %c0_i32_0 : i32, i32
  }
  func.func @transform_2(%arg0: i32) -> (i32, i32) {
    %c0_i32 = arith.constant 0 : i32
    %c0_i32_0 = arith.constant 0 : i32
    %c0_i32_1 = arith.constant 0 : i32
    return %c0_i32, %c0_i32_0 : i32, i32
  }
  func.func @transform_3(%arg0: i32) -> (i32, i32) {
    %c0_i32 = arith.constant 0 : i32
    %c0_i32_0 = arith.constant 0 : i32
    %c0_i32_1 = arith.constant 0 : i32
    return %c0_i32, %c0_i32_0 : i32, i32
  }
  func.func @transform_4(%arg0: i32) -> (i32, i32) {
    %c0_i32 = arith.constant 0 : i32
    %c0_i32_0 = arith.constant 0 : i32
    %c0_i32_1 = arith.constant 0 : i32
    return %c0_i32, %c0_i32_0 : i32, i32
  }
  func.func @transform_5(%arg0: i32) -> (i32, i32) {
    %c0_i32 = arith.constant 0 : i32
    %c0_i32_0 = arith.constant 0 : i32
    %c0_i32_1 = arith.constant 0 : i32
    return %c0_i32, %c0_i32_0 : i32, i32
  }
  func.func @transform_6(%arg0: i32) -> (i32, i32) {
    %c0_i32 = arith.constant 0 : i32
    %c0_i32_0 = arith.constant 0 : i32
    %c0_i32_1 = arith.constant 0 : i32
    return %c0_i32, %c0_i32_0 : i32, i32
  }
  func.func @transform_7(%arg0: i32) -> (i32, i32) {
    %c0_i32 = arith.constant 0 : i32
    %c0_i32_0 = arith.constant 0 : i32
    %c0_i32_1 = arith.constant 0 : i32
    return %c0_i32, %c0_i32_0 : i32, i32
  }
  func.func @transform_8(%arg0: i32) -> (i32, i32) {
    %c0_i32 = arith.constant 0 : i32
    %c0_i32_0 = arith.constant 0 : i32
    %c0_i32_1 = arith.constant 0 : i32
    return %c0_i32, %c0_i32_0 : i32, i32
  }
  func.func @transform_9(%arg0: i32) -> (i32, i32) {
    %c0_i32 = arith.constant 0 : i32
    %c0_i32_0 = arith.constant 0 : i32
    return %c0_i32, %arg0 : i32, i32
  }
}

</mosaic_0001>

<llo_original>
// kernel: tpu_custom_call.1
$region0: #{tpu_custom_call.1}
  #allocation0 [shape = 'u32[]', space=smem, size = 0x4, offset = 0x4, fixed_abs, tag = 'smem constant byte address 0x4 - core index']
  #allocation1 [shape = 'u32[144,128]{1,0:T(1,128)}', space=vmem, size = 0x12000, scoped, tag = 'internal scratch']
  #allocation2 [shape = 'f32[1,1]{1,0:T(1,128)S(1)}', space=vmem, size = 0x200, scoped, tag = 'scoped memory for tpu_custom_call.1']
  %s0 = inlined_call_operand.vmem [shape: f32[128,32], index: 0, kind: input, shape index: {}]
  %s1 = inlined_call_operand.vmem [shape: bf16[32,128], index: 1, kind: input, shape index: {}]
  %s2 = inlined_call_operand.vmem [shape: f32[1,128], index: 2, kind: input, shape index: {}]
  %s3 = inlined_call_operand.vmem [shape: bf16[64,128], index: 3, kind: input, shape index: {}]
  %s4 = inlined_call_operand.vmem [shape: f32[64,1], index: 4, kind: input, shape index: {}]
  %s5 = inlined_call_operand.vmem [shape: bf16[32,64], index: 5, kind: input, shape index: {}]
  %s6 = inlined_call_operand.vmem [shape: f32[32,1], index: 6, kind: input, shape index: {}]
  %s7 = inlined_call_operand.vmem [shape: bf16[1,32], index: 7, kind: input, shape index: {}]
  %s8 = inlined_call_operand.<no memory space> [shape: f32[1,1], index: 8, kind: input, shape index: {}]
  %s9 = inlined_call_operand.hbm [shape: f32[1,128], index: 9, kind: output, shape index: {}]
  %s10 = sld [smem:[#allocation0]]
  $region46: #{tpu_custom_call.1} parent=0
    _
  %s12 = ssub.s32 1, %s10
  %s13 = scalar_select 0, %s12, %s10
  %v14 = vstv %s8
  %15 = vst [vmem:[#allocation2] sm:$0x1] %v14
  $region1: #{tpu_custom_call.1} parent=0
    #allocation3 [shape = 'u8[512]{0}', space=vmem, size = 0x400, scoped, tag = 'output window, operand 0, single buffered']
    #allocation4 [shape = 's32[1]{0}', space=sflag, size = 0x4, scoped, tag = 'scoped memory for tpu_custom_call.1']
    %16 = vsyncpa [#allocation4], 0
    // Predicated region
    $region2: #{tpu_custom_call.1} parent=1 // pred_check
      _
    $region3: #{tpu_custom_call.1} parent=1 // pred_check_branch
      %18 = sbr.rel (0) target = $region5
    $region4: #{tpu_custom_call.1} parent=1 // pred_region
      _
    $region5: #{tpu_custom_call.1} parent=1 // pred_fallthru
      _
    // Predicated region
    $region6: #{tpu_custom_call.1} parent=1 // pred_check
      _
    $region7: #{tpu_custom_call.1} parent=1 // pred_check_branch
      %20 = sbr.rel (0) target = $region9
    $region8: #{tpu_custom_call.1} parent=1 // pred_region
      _
    $region9: #{tpu_custom_call.1} parent=1 // pred_fallthru
      _
    // Predicated region
    $region10: #{tpu_custom_call.1} parent=1 // pred_check
      _
    $region11: #{tpu_custom_call.1} parent=1 // pred_check_branch
      %22 = sbr.rel (0) target = $region13
    $region12: #{tpu_custom_call.1} parent=1 // pred_region
      _
    $region13: #{tpu_custom_call.1} parent=1 // pred_fallthru
      _
    // Predicated region
    $region14: #{tpu_custom_call.1} parent=1 // pred_check
      _
    $region15: #{tpu_custom_call.1} parent=1 // pred_check_branch
      %24 = sbr.rel (0) target = $region17
    $region16: #{tpu_custom_call.1} parent=1 // pred_region
      _
    $region17: #{tpu_custom_call.1} parent=1 // pred_fallthru
      _
    // Predicated region
    $region18: #{tpu_custom_call.1} parent=1 // pred_check
      _
    $region19: #{tpu_custom_call.1} parent=1 // pred_check_branch
      %26 = sbr.rel (0) target = $region21
    $region20: #{tpu_custom_call.1} parent=1 // pred_region
      _
    $region21: #{tpu_custom_call.1} parent=1 // pred_fallthru
      _
    // Predicated region
    $region22: #{tpu_custom_call.1} parent=1 // pred_check
      _
    $region23: #{tpu_custom_call.1} parent=1 // pred_check_branch
      %28 = sbr.rel (0) target = $region25
    $region24: #{tpu_custom_call.1} parent=1 // pred_region
      _
    $region25: #{tpu_custom_call.1} parent=1 // pred_fallthru
      _
    // Predicated region
    $region26: #{tpu_custom_call.1} parent=1 // pred_check
      _
    $region27: #{tpu_custom_call.1} parent=1 // pred_check_branch
      %30 = sbr.rel (0) target = $region29
    $region28: #{tpu_custom_call.1} parent=1 // pred_region
      _
    $region29: #{tpu_custom_call.1} parent=1 // pred_fallthru
      _
    // Predicated region
    $region30: #{tpu_custom_call.1} parent=1 // pred_check
      _
    $region31: #{tpu_custom_call.1} parent=1 // pred_check_branch
      %32 = sbr.rel (0) target = $region33
    $region32: #{tpu_custom_call.1} parent=1 // pred_region
      _
    $region33: #{tpu_custom_call.1} parent=1 // pred_fallthru
      _
    // Predicated region
    $region34: #{tpu_custom_call.1} parent=1 // pred_check
      _
    $region35: #{tpu_custom_call.1} parent=1 // pred_check_branch
      %34 = sbr.rel (0) target = $region37
    $region36: #{tpu_custom_call.1} parent=1 // pred_region
      _
    $region37: #{tpu_custom_call.1} parent=1 // pred_fallthru
      _
    %v36 = vld [vmem:[%s0] sm:$0xff]
    %v37 = vld [vmem:[%s0 + $0x8] sm:$0xff]
    %v38 = vld [vmem:[%s0 + $0x10] sm:$0xff]
    %v39 = vld [vmem:[%s0 + $0x18] sm:$0xff]
    %v40 = vld [vmem:[%s0 + $0x20] sm:$0xff]
    %v41 = vld [vmem:[%s0 + $0x28] sm:$0xff]
    %v42 = vld [vmem:[%s0 + $0x30] sm:$0xff]
    %v43 = vld [vmem:[%s0 + $0x38] sm:$0xff]
    %v44 = vld [vmem:[%s0 + $0x40] sm:$0xff]
    %v45 = vld [vmem:[%s0 + $0x48] sm:$0xff]
    %v46 = vld [vmem:[%s0 + $0x50] sm:$0xff]
    %v47 = vld [vmem:[%s0 + $0x58] sm:$0xff]
    %v48 = vld [vmem:[%s0 + $0x60] sm:$0xff]
    %v49 = vld [vmem:[%s0 + $0x68] sm:$0xff]
    %v50 = vld [vmem:[%s0 + $0x70] sm:$0xff]
    %v51 = vld [vmem:[%s0 + $0x78] sm:$0xff]
    %v52 = vpack.c.bf16 %v37, %v36
    %v53 = vpack.c.bf16 %v39, %v38
    %v54 = vpack.c.bf16 %v41, %v40
    %v55 = vpack.c.bf16 %v43, %v42
    %v56 = vpack.c.bf16 %v45, %v44
    %v57 = vpack.c.bf16 %v47, %v46
    %v58 = vpack.c.bf16 %v49, %v48
    %v59 = vpack.c.bf16 %v51, %v50
    %v60 = vld [vmem:[%s1] sm:$0xf]
    %v61 = vld [vmem:[%s1 + $0x4] sm:$0xf]
    %v62 = vld [vmem:[%s1 + $0x8] sm:$0xf]
    %v63 = vld [vmem:[%s1 + $0xc] sm:$0xf]
    %v64 = vld [vmem:[%s2] sm:$0x1]
    %v66 = vlaneseq
    %v67 = vshrl.u32 %v66, 7
    %v68 = vsub.s32 0, %v67
    %v69 = vrot.slane %v64, %v68
    %v75 = vunpack.c.l.b16 %v60
    %v76 = vunpack.c.l.b16 %v61
    %v77 = vunpack.c.l.b16 %v62
    %v78 = vunpack.c.l.b16 %v63
    %v79 = vpack.c.b16 %v76, %v75
    %v80 = vpack.c.b16 %v78, %v77
    %vm83 = vcmask 261120
    %v85 = vsel %vm83, %v52, 0
    %v88 = vsel %vm83, %v53, 0
    %v91 = vsel %vm83, %v54, 0
    %v94 = vsel %vm83, %v55, 0
    %v97 = vsel %vm83, %v56, 0
    %v100 = vsel %vm83, %v57, 0
    %v103 = vsel %vm83, %v58, 0
    %v106 = vsel %vm83, %v59, 0
    %108 = vmatprep.subr.bf16.mxu0 0
    %109 = vmatpush1.bf16.msra.mxu0 %v79
    %110 = vmatprep.subr.bf16.mxu0 0
    %111 = vmatpush1.bf16.msra.mxu0 %v80
    %112 = vmatprep.subr.bf16.mxu0 0
    %113 = vmatpush1.bf16.msra.mxu0 0
    %114 = vmatprep.subr.bf16.mxu0 0
    %115 = vmatpush1.bf16.msra.mxu0 0
    %116 = vmatprep.subr.bf16.mxu0 0
    %117 = vmatpush1.bf16.msra.mxu0 0
    %118 = vmatprep.subr.bf16.mxu0 0
    %119 = vmatpush1.bf16.msra.mxu0 0
    %120 = vmatprep.subr.bf16.mxu0 0
    %121 = vmatpush1.bf16.msra.mxu0 0
    %122 = vmatprep.subr.bf16.mxu0 0
    %123 = vmatpush1.bf16.msra.mxu0 0
    %124 = vmatprep.subr.bf16.mxu0 0
    %125 = vmatpush1.bf16.msra.mxu0 0
    %126 = vmatprep.subr.bf16.mxu0 0
    %127 = vmatpush1.bf16.msra.mxu0 0
    %128 = vmatprep.subr.bf16.mxu0 0
    %129 = vmatpush1.bf16.msra.mxu0 0
    %130 = vmatprep.subr.bf16.mxu0 0
    %131 = vmatpush1.bf16.msra.mxu0 0
    %132 = vmatprep.subr.bf16.mxu0 0
    %133 = vmatpush1.bf16.msra.mxu0 0
    %134 = vmatprep.subr.bf16.mxu0 0
    %135 = vmatpush1.bf16.msra.mxu0 0
    %136 = vmatprep.subr.bf16.mxu0 0
    %137 = vmatpush1.bf16.msra.mxu0 0
    %138 = vmatprep.subr.bf16.mxu0 0
    %139 = vmatpush1.bf16.msra.mxu0 0
    %140 = vmatprep.mubr.bf16.mxu0 0
    %141 = vmatmul.mubr.bf16.gmra.mrb[0].mxu0 %v85
    %v142 = vpop.f32.mrb[0].mxu0
    %v143 = vadd.f32 %v69, %v142
    %v144 = vpop.f32.mrb[0].mxu0
    %v145 = vpop.f32.mrb[0].mxu0
    %v146 = vadd.f32 %v69, %v145
    %v147 = vpop.f32.mrb[0].mxu0
    %148 = vmatprep.mubr.bf16.mxu0 0
    %149 = vmatmul.mubr.bf16.gmra.mrb[0].mxu0 %v88
    %v150 = vpop.f32.mrb[0].mxu0
    %v151 = vadd.f32 %v69, %v150
    %v152 = vpop.f32.mrb[0].mxu0
    %v153 = vpop.f32.mrb[0].mxu0
    %v154 = vadd.f32 %v69, %v153
    %v155 = vpop.f32.mrb[0].mxu0
    %156 = vmatprep.mubr.bf16.mxu0 0
    %157 = vmatmul.mubr.bf16.gmra.mrb[0].mxu0 %v91
    %v158 = vpop.f32.mrb[0].mxu0
    %v159 = vadd.f32 %v69, %v158
    %v160 = vpop.f32.mrb[0].mxu0
    %v161 = vpop.f32.mrb[0].mxu0
    %v162 = vadd.f32 %v69, %v161
    %v163 = vpop.f32.mrb[0].mxu0
    %164 = vmatprep.mubr.bf16.mxu0 0
    %165 = vmatmul.mubr.bf16.gmra.mrb[0].mxu0 %v94
    %v166 = vpop.f32.mrb[0].mxu0
    %v167 = vadd.f32 %v69, %v166
    %v168 = vpop.f32.mrb[0].mxu0
    %v169 = vpop.f32.mrb[0].mxu0
    %v170 = vadd.f32 %v69, %v169
    %v171 = vpop.f32.mrb[0].mxu0
    %172 = vmatprep.mubr.bf16.mxu0 0
    %173 = vmatmul.mubr.bf16.gmra.mrb[0].mxu0 %v97
    %v174 = vpop.f32.mrb[0].mxu0
    %v175 = vadd.f32 %v69, %v174
    %v176 = vpop.f32.mrb[0].mxu0
    %v177 = vpop.f32.mrb[0].mxu0
    %v178 = vadd.f32 %v69, %v177
    %v179 = vpop.f32.mrb[0].mxu0
    %180 = vmatprep.mubr.bf16.mxu0 0
    %181 = vmatmul.mubr.bf16.gmra.mrb[0].mxu0 %v100
    %v182 = vpop.f32.mrb[0].mxu0
    %v183 = vadd.f32 %v69, %v182
    %v184 = vpop.f32.mrb[0].mxu0
    %v185 = vpop.f32.mrb[0].mxu0
    %v186 = vadd.f32 %v69, %v185
    %v187 = vpop.f32.mrb[0].mxu0
    %188 = vmatprep.mubr.bf16.mxu0 0
    %189 = vmatmul.mubr.bf16.gmra.mrb[0].mxu0 %v103
    %v190 = vpop.f32.mrb[0].mxu0
    %v191 = vadd.f32 %v69, %v190
    %v192 = vpop.f32.mrb[0].mxu0
    %v193 = vpop.f32.mrb[0].mxu0
    %v194 = vadd.f32 %v69, %v193
    %v195 = vpop.f32.mrb[0].mxu0
    %196 = vmatprep.mubr.bf16.mxu0 0
    %197 = vmatmul.mubr.bf16.gmra.mrb[0].mxu0 %v106
    %v198 = vpop.f32.mrb[0].mxu0
    %v199 = vadd.f32 %v69, %v198
    %v200 = vpop.f32.mrb[0].mxu0
    %v201 = vpop.f32.mrb[0].mxu0
    %v202 = vadd.f32 %v69, %v201
    %v203 = vpop.f32.mrb[0].mxu0
    %204 = vdwg.mxu0
    %v205 = vmax.f32 %v143, 0.0
    %v206 = vmax.f32 %v146, 0.0
    %v207 = vmax.f32 %v151, 0.0
    %v208 = vmax.f32 %v154, 0.0
    %v209 = vmax.f32 %v159, 0.0
    %v210 = vmax.f32 %v162, 0.0
    %v211 = vmax.f32 %v167, 0.0
    %v212 = vmax.f32 %v170, 0.0
    %v213 = vmax.f32 %v175, 0.0
    %v214 = vmax.f32 %v178, 0.0
    %v215 = vmax.f32 %v183, 0.0
    %v216 = vmax.f32 %v186, 0.0
    %v217 = vmax.f32 %v191, 0.0
    %v218 = vmax.f32 %v194, 0.0
    %v219 = vmax.f32 %v199, 0.0
    %v220 = vmax.f32 %v202, 0.0
    %v221 = vld [vmem:[%s3] sm:$0xf]
    %v222 = vld [vmem:[%s3 + $0x4] sm:$0xf]
    %v223 = vld [vmem:[%s3 + $0x8] sm:$0xf]
    %v224 = vld [vmem:[%s3 + $0xc] sm:$0xf]
    %v225 = vld [vmem:[%s3 + $0x10] sm:$0xf]
    %v226 = vld [vmem:[%s3 + $0x14] sm:$0xf]
    %v227 = vld [vmem:[%s3 + $0x18] sm:$0xf]
    %v228 = vld [vmem:[%s3 + $0x1c] sm:$0xf]
    %v229 = vpack.c.bf16 %v206, %v205
    %v230 = vpack.c.bf16 %v208, %v207
    %v231 = vpack.c.bf16 %v210, %v209
    %v232 = vpack.c.bf16 %v212, %v211
    %v233 = vpack.c.bf16 %v214, %v213
    %v234 = vpack.c.bf16 %v216, %v215
    %v235 = vpack.c.bf16 %v218, %v217
    %v236 = vpack.c.bf16 %v220, %v219
    %v237 = vld [vmem:[%s4] sm:$0xff]
    %v238 = vld [vmem:[%s4 + $0x8] sm:$0xff]
    %v239 = vld [vmem:[%s4 + $0x10] sm:$0xff]
    %v240 = vld [vmem:[%s4 + $0x18] sm:$0xff]
    %v241 = vld [vmem:[%s4 + $0x20] sm:$0xff]
    %v242 = vld [vmem:[%s4 + $0x28] sm:$0xff]
    %v243 = vld [vmem:[%s4 + $0x30] sm:$0xff]
    %v244 = vld [vmem:[%s4 + $0x38] sm:$0xff]
    %246 = vset.pattern.permute.xlu0 0
    %247 = vperm.xlu0 %246, %v237
    %v248 = vpop.permute.xlu0 %247
    %251 = vset.pattern.permute.xlu0 0
    %252 = vperm.xlu0 %251, %v238
    %v253 = vpop.permute.xlu0 %252
    %256 = vset.pattern.permute.xlu0 0
    %257 = vperm.xlu0 %256, %v239
    %v258 = vpop.permute.xlu0 %257
    %261 = vset.pattern.permute.xlu0 0
    %262 = vperm.xlu0 %261, %v240
    %v263 = vpop.permute.xlu0 %262
    %266 = vset.pattern.permute.xlu0 0
    %267 = vperm.xlu0 %266, %v241
    %v268 = vpop.permute.xlu0 %267
    %271 = vset.pattern.permute.xlu0 0
    %272 = vperm.xlu0 %271, %v242
    %v273 = vpop.permute.xlu0 %272
    %276 = vset.pattern.permute.xlu0 0
    %277 = vperm.xlu0 %276, %v243
    %v278 = vpop.permute.xlu0 %277
    %281 = vset.pattern.permute.xlu0 0
    %282 = vperm.xlu0 %281, %v244
    %v283 = vpop.permute.xlu0 %282
    %v293 = vunpack.c.l.b16 %v221
    %v294 = vunpack.c.l.b16 %v222
    %v295 = vunpack.c.l.b16 %v223
    %v296 = vunpack.c.l.b16 %v224
    %v297 = vunpack.c.l.b16 %v225
    %v298 = vunpack.c.l.b16 %v226
    %v299 = vunpack.c.l.b16 %v227
    %v300 = vunpack.c.l.b16 %v228
    %v301 = vpack.c.b16 %v294, %v293
    %v302 = vpack.c.b16 %v296, %v295
    %v303 = vpack.c.b16 %v298, %v297
    %v304 = vpack.c.b16 %v300, %v299
    %309 = vmatprep.subr.bf16.mxu0 0
    %310 = vmatpush1.bf16.xpose.msra.mxu0 %v229
    %311 = vmatprep.subr.bf16.mxu0 0
    %312 = vmatpush1.bf16.xpose.msra.mxu0 %v230
    %313 = vmatprep.subr.bf16.mxu0 0
    %314 = vmatpush1.bf16.xpose.msra.mxu0 %v231
    %315 = vmatprep.subr.bf16.mxu0 0
    %316 = vmatpush1.bf16.xpose.msra.mxu0 %v232
    %317 = vmatprep.subr.bf16.mxu0 0
    %318 = vmatpush1.bf16.xpose.msra.mxu0 %v233
    %319 = vmatprep.subr.bf16.mxu0 0
    %320 = vmatpush1.bf16.xpose.msra.mxu0 %v234
    %321 = vmatprep.subr.bf16.mxu0 0
    %322 = vmatpush1.bf16.xpose.msra.mxu0 %v235
    %323 = vmatprep.subr.bf16.mxu0 0
    %324 = vmatpush1.bf16.xpose.msra.mxu0 %v236
    %325 = vmatprep.subr.bf16.mxu0 0
    %326 = vmatpush1.bf16.xpose.msra.mxu0 0
    %327 = vmatprep.subr.bf16.mxu0 0
    %328 = vmatpush1.bf16.xpose.msra.mxu0 0
    %329 = vmatprep.subr.bf16.mxu0 0
    %330 = vmatpush1.bf16.xpose.msra.mxu0 0
    %331 = vmatprep.subr.bf16.mxu0 0
    %332 = vmatpush1.bf16.xpose.msra.mxu0 0
    %333 = vmatprep.subr.bf16.mxu0 0
    %334 = vmatpush1.bf16.xpose.msra.mxu0 0
    %335 = vmatprep.subr.bf16.mxu0 0
    %336 = vmatpush1.bf16.xpose.msra.mxu0 0
    %337 = vmatprep.subr.bf16.mxu0 0
    %338 = vmatpush1.bf16.xpose.msra.mxu0 0
    %339 = vmatprep.subr.bf16.mxu0 0
    %340 = vmatpush1.bf16.xpose.msra.mxu0 0
    %341 = vmatprep.mubr.bf16.mxu0 0
    %342 = vmatmul.mubr.bf16.gmra.mrb[0].mxu0 %v301
    %v343 = vpop.f32.mrb[0].mxu0
    %v344 = vadd.f32 %v248, %v343
    %v345 = vpop.f32.mrb[0].mxu0
    %v346 = vpop.f32.mrb[0].mxu0
    %v347 = vadd.f32 %v253, %v346
    %v348 = vpop.f32.mrb[0].mxu0
    %349 = vmatprep.mubr.bf16.mxu0 0
    %350 = vmatmul.mubr.bf16.gmra.mrb[0].mxu0 %v302
    %v351 = vpop.f32.mrb[0].mxu0
    %v352 = vadd.f32 %v258, %v351
    %v353 = vpop.f32.mrb[0].mxu0
    %v354 = vpop.f32.mrb[0].mxu0
    %v355 = vadd.f32 %v263, %v354
    %v356 = vpop.f32.mrb[0].mxu0
    %357 = vmatprep.mubr.bf16.mxu0 0
    %358 = vmatmul.mubr.bf16.gmra.mrb[0].mxu0 %v303
    %v359 = vpop.f32.mrb[0].mxu0
    %v360 = vadd.f32 %v268, %v359
    %v361 = vpop.f32.mrb[0].mxu0
    %v362 = vpop.f32.mrb[0].mxu0
    %v363 = vadd.f32 %v273, %v362
    %v364 = vpop.f32.mrb[0].mxu0
    %365 = vmatprep.mubr.bf16.mxu0 0
    %366 = vmatmul.mubr.bf16.gmra.mrb[0].mxu0 %v304
    %v367 = vpop.f32.mrb[0].mxu0
    %v368 = vadd.f32 %v278, %v367
    %v369 = vpop.f32.mrb[0].mxu0
    %v370 = vpop.f32.mrb[0].mxu0
    %v371 = vadd.f32 %v283, %v370
    %v372 = vpop.f32.mrb[0].mxu0
    %373 = vdwg.mxu0
    %v374 = vmax.f32 %v344, 0.0
    %v375 = vmax.f32 %v347, 0.0
    %v376 = vmax.f32 %v352, 0.0
    %v377 = vmax.f32 %v355, 0.0
    %v378 = vmax.f32 %v360, 0.0
    %v379 = vmax.f32 %v363, 0.0
    %v380 = vmax.f32 %v368, 0.0
    %v381 = vmax.f32 %v371, 0.0
    %v382 = vld [vmem:[%s5] sm:$0xf]
    %v383 = vld [vmem:[%s5 + $0x4] sm:$0xf]
    %v384 = vld [vmem:[%s5 + $0x8] sm:$0xf]
    %v385 = vld [vmem:[%s5 + $0xc] sm:$0xf]
    %v386 = vpack.c.bf16 %v375, %v374
    %v387 = vpack.c.bf16 %v377, %v376
    %v388 = vpack.c.bf16 %v379, %v378
    %v389 = vpack.c.bf16 %v381, %v380
    %v390 = vld [vmem:[%s6] sm:$0xff]
    %v391 = vld [vmem:[%s6 + $0x8] sm:$0xff]
    %v392 = vld [vmem:[%s6 + $0x10] sm:$0xff]
    %v393 = vld [vmem:[%s6 + $0x18] sm:$0xff]
    %395 = vset.pattern.permute.xlu0 0
    %396 = vperm.xlu0 %395, %v390
    %v397 = vpop.permute.xlu0 %396
    %400 = vset.pattern.permute.xlu0 0
    %401 = vperm.xlu0 %400, %v391
    %v402 = vpop.permute.xlu0 %401
    %405 = vset.pattern.permute.xlu0 0
    %406 = vperm.xlu0 %405, %v392
    %v407 = vpop.permute.xlu0 %406
    %410 = vset.pattern.permute.xlu0 0
    %411 = vperm.xlu0 %410, %v393
    %v412 = vpop.permute.xlu0 %411
    %v418 = vunpack.c.l.b16 %v382
    %v419 = vunpack.c.l.b16 %v383
    %v420 = vunpack.c.l.b16 %v384
    %v421 = vunpack.c.l.b16 %v385
    %v422 = vpack.c.b16 %v419, %v418
    %v423 = vpack.c.b16 %v421, %v420
    %vm424 = vcmask 523264
    %v426 = vsel %vm424, %v422, 0
    %v429 = vsel %vm424, %v423, 0
    %431 = vmatprep.subr.bf16.mxu0 0
    %432 = vmatpush1.bf16.msra.mxu0 %v386
    %433 = vmatprep.subr.bf16.mxu0 0
    %434 = vmatpush1.bf16.msra.mxu0 %v387
    %435 = vmatprep.subr.bf16.mxu0 0
    %436 = vmatpush1.bf16.msra.mxu0 %v388
    %437 = vmatprep.subr.bf16.mxu0 0
    %438 = vmatpush1.bf16.msra.mxu0 %v389
    %439 = vmatprep.subr.bf16.mxu0 0
    %440 = vmatpush1.bf16.msra.mxu0 0
    %441 = vmatprep.subr.bf16.mxu0 0
    %442 = vmatpush1.bf16.msra.mxu0 0
    %443 = vmatprep.subr.bf16.mxu0 0
    %444 = vmatpush1.bf16.msra.mxu0 0
    %445 = vmatprep.subr.bf16.mxu0 0
    %446 = vmatpush1.bf16.msra.mxu0 0
    %447 = vmatprep.subr.bf16.mxu0 0
    %448 = vmatpush1.bf16.msra.mxu0 0
    %449 = vmatprep.subr.bf16.mxu0 0
    %450 = vmatpush1.bf16.msra.mxu0 0
    %451 = vmatprep.subr.bf16.mxu0 0
    %452 = vmatpush1.bf16.msra.mxu0 0
    %453 = vmatprep.subr.bf16.mxu0 0
    %454 = vmatpush1.bf16.msra.mxu0 0
    %455 = vmatprep.subr.bf16.mxu0 0
    %456 = vmatpush1.bf16.msra.mxu0 0
    %457 = vmatprep.subr.bf16.mxu0 0
    %458 = vmatpush1.bf16.msra.mxu0 0
    %459 = vmatprep.subr.bf16.mxu0 0
    %460 = vmatpush1.bf16.msra.mxu0 0
    %461 = vmatprep.subr.bf16.mxu0 0
    %462 = vmatpush1.bf16.msra.mxu0 0
    %463 = vmatprep.mubr.bf16.mxu0 0
    %464 = vmatmul.mubr.bf16.gmra.mrb[0].mxu0 %v426
    %v465 = vpop.f32.mrb[0].mxu0
    %v466 = vadd.f32 %v397, %v465
    %v467 = vpop.f32.mrb[0].mxu0
    %v468 = vpop.f32.mrb[0].mxu0
    %v469 = vadd.f32 %v402, %v468
    %v470 = vpop.f32.mrb[0].mxu0
    %471 = vmatprep.mubr.bf16.mxu0 0
    %472 = vmatmul.mubr.bf16.gmra.mrb[0].mxu0 %v429
    %v473 = vpop.f32.mrb[0].mxu0
    %v474 = vadd.f32 %v407, %v473
    %v475 = vpop.f32.mrb[0].mxu0
    %v476 = vpop.f32.mrb[0].mxu0
    %v477 = vadd.f32 %v412, %v476
    %v478 = vpop.f32.mrb[0].mxu0
    %479 = vdwg.mxu0
    %v480 = vmax.f32 %v466, 0.0
    %v481 = vmax.f32 %v469, 0.0
    %v482 = vmax.f32 %v474, 0.0
    %v483 = vmax.f32 %v477, 0.0
    %v484 = vld [vmem:[%s7] sm:$0x1]
    %v485 = vpack.c.bf16 %v481, %v480
    %v486 = vpack.c.bf16 %v483, %v482
    %v487 = vld [vmem:[#allocation2] sm:$0x1]
    %489 = vset.pattern.permute.xlu0 0
    %490 = vperm.xlu0 %489, %v487
    %v491 = vpop.permute.xlu0 %490
    %v493 = vlaneseq
    %v494 = vshrl.u32 %v493, 7
    %v495 = vsub.s32 0, %v494
    %v496 = vrot.slane %v491, %v495
    %v498 = vsel %vm83, %v484, 0
    %500 = vmatprep.subr.bf16.mxu0 0
    %501 = vmatpush1.bf16.msra.mxu0 %v485
    %502 = vmatprep.subr.bf16.mxu0 0
    %503 = vmatpush1.bf16.msra.mxu0 %v486
    %504 = vmatprep.subr.bf16.mxu0 0
    %505 = vmatpush1.bf16.msra.mxu0 0
    %506 = vmatprep.subr.bf16.mxu0 0
    %507 = vmatpush1.bf16.msra.mxu0 0
    %508 = vmatprep.subr.bf16.mxu0 0
    %509 = vmatpush1.bf16.msra.mxu0 0
    %510 = vmatprep.subr.bf16.mxu0 0
    %511 = vmatpush1.bf16.msra.mxu0 0
    %512 = vmatprep.subr.bf16.mxu0 0
    %513 = vmatpush1.bf16.msra.mxu0 0
    %514 = vmatprep.subr.bf16.mxu0 0
    %515 = vmatpush1.bf16.msra.mxu0 0
    %516 = vmatprep.subr.bf16.mxu0 0
    %517 = vmatpush1.bf16.msra.mxu0 0
    %518 = vmatprep.subr.bf16.mxu0 0
    %519 = vmatpush1.bf16.msra.mxu0 0
    %520 = vmatprep.subr.bf16.mxu0 0
    %521 = vmatpush1.bf16.msra.mxu0 0
    %522 = vmatprep.subr.bf16.mxu0 0
    %523 = vmatpush1.bf16.msra.mxu0 0
    %524 = vmatprep.subr.bf16.mxu0 0
    %525 = vmatpush1.bf16.msra.mxu0 0
    %526 = vmatprep.subr.bf16.mxu0 0
    %527 = vmatpush1.bf16.msra.mxu0 0
    %528 = vmatprep.subr.bf16.mxu0 0
    %529 = vmatpush1.bf16.msra.mxu0 0
    %530 = vmatprep.subr.bf16.mxu0 0
    %531 = vmatpush1.bf16.msra.mxu0 0
    %532 = vmatprep.mubr.bf16.mxu0 0
    %533 = vmatmul.mubr.bf16.gmra.mrb[0].mxu0 %v498
    %v534 = vpop.f32.mrb[0].mxu0
    %v535 = vadd.f32 %v496, %v534
    %v536 = vpop.f32.mrb[0].mxu0
    %v537 = vpop.f32.mrb[0].mxu0
    %v538 = vpop.f32.mrb[0].mxu0
    %539 = vdwg.mxu0
    %540 = vst [vmem:[#allocation3] sm:$0x1] %v535
    // Predicated region
    $region38: #{tpu_custom_call.1} parent=1 // pred_check
      _
    $region39: #{tpu_custom_call.1} parent=1 // pred_check_branch
      %542 = sbr.rel (0) target = $region41
    $region40: #{tpu_custom_call.1} parent=1 // pred_region
      %s544 = ssub.s32 16, 16
      %545 = vsyncadd [#allocation4], %s544
      %s547 = sshll.u32 [#allocation3], 4
      %s548 = int_to_ptr.vmem [resolvable:$true] %s547
      %550 = dma.vmem_to_hbm [thread:$0]  %s548, 16, %s9, [#allocation4]
    $region41: #{tpu_custom_call.1} parent=1 // pred_fallthru
      _
    // Predicated region
    $region42: #{tpu_custom_call.1} parent=1 // pred_check
      _
    $region43: #{tpu_custom_call.1} parent=1 // pred_check_branch
      %552 = sbr.rel (0) target = $region45
    $region44: #{tpu_custom_call.1} parent=1 // pred_region
      %553 = dma.done [#allocation4], 16
    $region45: #{tpu_custom_call.1} parent=1 // pred_fallthru
      _
    %554 = vsyncpa [#allocation4], 1

</llo_original>
